<compile_context>
chip_gen: v6e
topology: v6e:2x2x1
jax: 0.10.0
libtpu: 0.0.40
codegen_flags: <defaults>
</compile_context>

<pallas_src>
import jax
import jax.numpy as jnp
from jax import lax
from jax.experimental import pallas as pl
from jax.experimental.pallas import tpu as pltpu


_BLOCK_B = 8192  # max batch rows per grid step (~1 MB HBM/step; amortizes step cost)


def _round_up(x, m):
    return (x + m - 1) // m * m


def _choose_tile(B):
    """Batch rows per grid step."""
    if B <= _BLOCK_B:
        # Single grid step; block == full array dims, so no alignment constraints
        # and no padding needed.
        return B
    # Large batch: biggest tile <= _BLOCK_B, but keep >= 4 grid steps so v7x's
    # two TensorCores each stream several blocks ("parallel" grid axis).
    return min(_BLOCK_B, max(128, _round_up(pl.cdiv(B, 4), 128)))


def rlagnet_kernel(x_ref, w1_ref, wd_ref, u_ref, act_ref):
    """One batch tile.

    x_ref  : (TB, C)  f32/bf16 input features (batch on sublanes, features on lanes)
    w1_ref : (C, R)   f32      conv_reduce.weight, pre-transposed at param-load time
    wd_ref : (1, R)   f32      conv_expand.weight[1] - conv_expand.weight[0]
    u_ref  : (1, TB)  f32      uniform samples in [0, 1), lane-major
    act_ref: (1, TB)  i32      sampled actions, lane-major (lane-dense stores)
    """
    x = x_ref[...]
    # Cast the tiny (C, R) weight to x's dtype: bf16 x then runs a native bf16
    # MXU matmul with f32 accumulation (halves x HBM traffic vs f32 x).
    w1 = w1_ref[...].astype(x.dtype)

    # Linear(in_chs -> reduced, bias=False) + ReLU          (MXU + VPU)
    h = jnp.dot(x, w1, preferred_element_type=jnp.float32)  # (TB, R) f32
    h = jnp.maximum(h, 0.0)

    # Two-class softmax + inverse-CDF sampling collapses to a sigmoid
    # threshold:  p0 = softmax(logits)[:, 0] = sigmoid(-(h @ (W_e[1]-W_e[0])))
    # Contract over R with the result laid out lane-major (1, TB).
    d = lax.dot_general(wd_ref[...], h, (((1,), (1,)), ((), ())),
                        preferred_element_type=jnp.float32)  # (1, TB)
    e = jnp.exp(d)                                           # EUP slot

    # action = 0 if u < p0 else 1, with p0 = 1/(1+e).  Reciprocal-free form:
    #   u >= 1/(1+e)  <=>  u*(1+e) >= 1   (1+e > 0)
    # (Measure-zero corner: u==0 with e==inf gives 0*inf=nan -> action 0; the
    #  exact-p0==0 tie — irrelevant in practice.)
    act_ref[...] = (u_ref[...] * (1.0 + e) >= 1.0).astype(jnp.int32)


def prepare_rlagnet_params(w_reduce, w_expand):
    """One-time parameter prep, hoisted out of the per-call path.

    w_reduce: (R, C) torch Linear weight layout (out, in)
    w_expand: (2, R) torch Linear weight layout (out, in)
    Returns (w1 = w_reduce.T : (C, R),  w_diff = w_expand[1]-w_expand[0] : (1, R)).
    """
    w1 = jnp.asarray(w_reduce, jnp.float32).T
    w_diff = (jnp.asarray(w_expand[1], jnp.float32)
              - jnp.asarray(w_expand[0], jnp.float32)).reshape(1, -1)
    return w1, w_diff


@jax.jit
def rlagnet_forward(x, w1, w_diff, uniforms):
    """x: (B, C) features (f32 or bf16), w1: (C, R), w_diff: (1, R),
    uniforms: (B,) in [0,1).
    Returns (B,) int32 actions sampled from softmax(relu(x@W_r.T)@W_e.T)."""
    B, C = x.shape
    R = w1.shape[1]

    tb = _choose_tile(B)
    g = pl.cdiv(B, tb)            # ragged last block handled by Pallas (no jnp.pad)

    u = uniforms.astype(jnp.float32).reshape(1, B)   # lane-major, free reshape

    out = pl.pallas_call(
        rlagnet_kernel,
        out_shape=jax.ShapeDtypeStruct((1, B), jnp.int32),
        grid_spec=pltpu.PrefetchScalarGridSpec(
            num_scalar_prefetch=0,
            grid=(g,),
            in_specs=[
                pl.BlockSpec((tb, C), lambda i: (i, 0)),   # x tile (streamed)
                pl.BlockSpec((C, R), lambda i: (0, 0)),    # resident weight
                pl.BlockSpec((1, R), lambda i: (0, 0)),    # resident w_diff
                pl.BlockSpec((1, tb), lambda i: (0, i)),   # uniforms, lane-major
            ],
            out_specs=pl.BlockSpec((1, tb), lambda i: (0, i)),
        ),
        compiler_params=pltpu.CompilerParams(
            dimension_semantics=("parallel",),
            # tb up to 8192: padded x double-buffer + h temp ~12-13 MiB, which
            # trips v5e's 16 MiB default scoped VMEM; 32 MiB is safe on all gens.
            vmem_limit_bytes=32 * 1024 * 1024,
        ),
    )(x, w1, w_diff, u)
    return out[0]


# ----------------------------- verification ---------------------------------

def _reference_p0(x, w_reduce, w_expand):
    """Pure-JAX reference of the module semantics (softmax path)."""
    h = jnp.maximum(x @ w_reduce.T, 0.0)
    probs = jax.nn.softmax(h @ w_expand.T, axis=1)
    return probs[:, 0]


def _check(B, in_chs, se_ratio, key, x_dtype=jnp.float32, margin=1e-4):
    reduced = int(in_chs * se_ratio)
    num_actions = 2
    kx, kw1, kw2, ku = jax.random.split(key, 4)
    x = jax.random.normal(kx, (B, in_chs), dtype=jnp.float32)
    w_reduce = jax.random.normal(kw1, (reduced, in_chs), dtype=jnp.float32) * 0.1
    w_expand = jax.random.normal(kw2, (num_actions, reduced), dtype=jnp.float32) * 0.1
    uniforms = jax.random.uniform(ku, (B,), dtype=jnp.float32)

    x_in = x.astype(x_dtype)                                # producer-side cast
    w1, w_diff = prepare_rlagnet_params(w_reduce, w_expand)  # one-time prep
    actions = jax.block_until_ready(rlagnet_forward(x_in, w1, w_diff, uniforms))

    # Reference from the same (possibly bf16-rounded) x, full f32 softmax path.
    p0_ref = _reference_p0(x_in.astype(jnp.float32), w_reduce, w_expand)
    actions_ref = jnp.where(uniforms < p0_ref, 0, 1).astype(jnp.int32)

    assert actions.shape == (B,) and actions.dtype == jnp.int32
    assert bool(jnp.all((actions == 0) | (actions == 1)))
    # Decisions must match except where u sits numerically on the threshold.
    bad = (actions != actions_ref) & (jnp.abs(uniforms - p0_ref) > margin)
    assert not bool(jnp.any(bad)), "kernel/reference action mismatch"


if __name__ == "__main__":
    key = jax.random.PRNGKey(0)
    k_small, k_big = jax.random.split(key)

    # Small shape consistent with the module: batch=8, in_chs=32, se_ratio=0.25
    # (single grid step, f32, block == full array).
    _check(B=8, in_chs=32, se_ratio=0.25, key=k_small, x_dtype=jnp.float32,
           margin=1e-4)
    # Gridded path: >4 steps, ragged last block (no wrapper pad), bf16 x,
    # lane-dense int32 output.  Wider margin for bf16 rounding near threshold.
    _check(B=10000, in_chs=32, se_ratio=0.25, key=k_big, x_dtype=jnp.bfloat16,
           margin=1e-2)

    print("KERNEL_OK")
</pallas_src>

<mosaic_0001>
module attributes {stable_mosaic.version = 11 : i64} {
  func.func @rlagnet_kernel(%arg0: i32, %arg1: memref<8x32xf32, #tpu.memory_space<vmem>>, %arg2: memref<32x8xf32, #tpu.memory_space<vmem>>, %arg3: memref<1x8xf32, #tpu.memory_space<vmem>>, %arg4: memref<1x8xf32, #tpu.memory_space<vmem>>, %arg5: memref<1x8xi32, #tpu.memory_space<vmem>>) attributes {dimension_semantics = [#tpu.dimension_semantics<parallel>], iteration_bounds = array<i64: 1>, scalar_prefetch = 0 : i64, scratch_operands = 0 : i64, tpu.core_type = #tpu.core_type<tc>, window_params = [{transform_indices = @transform_0, window_bounds = array<i64: 8, 32>}, {pipeline_mode = #tpu.pipeline_mode<synchronous>, transform_indices = @transform_1, window_bounds = array<i64: 32, 8>}, {pipeline_mode = #tpu.pipeline_mode<synchronous>, transform_indices = @transform_2, window_bounds = array<i64: 1, 8>}, {transform_indices = @transform_3, window_bounds = array<i64: 1, 8>}, {transform_indices = @transform_4, window_bounds = array<i64: 1, 8>}]} {
    %c0 = arith.constant 0 : index
    %c0_0 = arith.constant 0 : index
    %0 = vector.load %arg1[%c0, %c0_0] : memref<8x32xf32, #tpu.memory_space<vmem>>, vector<8x32xf32>
    %c0_1 = arith.constant 0 : index
    %c0_2 = arith.constant 0 : index
    %1 = vector.load %arg2[%c0_1, %c0_2] : memref<32x8xf32, #tpu.memory_space<vmem>>, vector<32x8xf32>
    %cst = arith.constant dense<0.000000e+00> : vector<8x8xf32>
    %2 = tpu.matmul %0, %1, %cst {dimension_numbers = #tpu.dot_dimension_numbers<[1], [0], [0], [1], [0, 0, 1, 1], [], []>} : vector<8x32xf32>, vector<32x8xf32>, vector<8x8xf32> -> vector<8x8xf32>
    %cst_3 = arith.constant 0.000000e+00 : f32
    %3 = vector.broadcast %cst_3 : f32 to vector<8x8xf32>
    %4 = arith.maximumf %2, %3 : vector<8x8xf32>
    %c0_4 = arith.constant 0 : index
    %c0_5 = arith.constant 0 : index
    %5 = vector.load %arg3[%c0_4, %c0_5] : memref<1x8xf32, #tpu.memory_space<vmem>>, vector<1x8xf32>
    %cst_6 = arith.constant dense<0.000000e+00> : vector<1x8xf32>
    %6 = tpu.matmul %5, %4, %cst_6 {dimension_numbers = #tpu.dot_dimension_numbers<[1], [1], [0], [0], [0, 0, 1, 0], [], []>} : vector<1x8xf32>, vector<8x8xf32>, vector<1x8xf32> -> vector<1x8xf32>
    %7 = math.exp %6 : vector<1x8xf32>
    %c0_7 = arith.constant 0 : index
    %c0_8 = arith.constant 0 : index
    %8 = vector.load %arg4[%c0_7, %c0_8] : memref<1x8xf32, #tpu.memory_space<vmem>>, vector<1x8xf32>
    %cst_9 = arith.constant 1.000000e+00 : f32
    %9 = vector.broadcast %cst_9 : f32 to vector<1x8xf32>
    %10 = arith.addf %9, %7 : vector<1x8xf32>
    %11 = arith.mulf %8, %10 : vector<1x8xf32>
    %cst_10 = arith.constant 1.000000e+00 : f32
    %12 = vector.broadcast %cst_10 : f32 to vector<1x8xf32>
    %13 = arith.cmpf oge, %11, %12 : vector<1x8xf32>
    %14 = arith.extui %13 : vector<1x8xi1> to vector<1x8xi32>
    %c0_11 = arith.constant 0 : index
    %c0_12 = arith.constant 0 : index
    %15 = vector.load %arg5[%c0_11, %c0_12] : memref<1x8xi32, #tpu.memory_space<vmem>>, vector<1x8xi32>
    tpu.vector_store %arg5[%c0_11, %c0_12], %14 {strides = array<i32>} : memref<1x8xi32, #tpu.memory_space<vmem>>, vector<1x8xi32>,
    return
  }
  func.func @transform_0(%arg0: i32) -> (i32, i32) {
    %c0_i32 = arith.constant 0 : i32
    %c0_i32_0 = arith.constant 0 : i32
    return %arg0, %c0_i32 : i32, i32
  }
  func.func @transform_1(%arg0: i32) -> (i32, i32) {
    %c0_i32 = arith.constant 0 : i32
    %c0_i32_0 = arith.constant 0 : i32
    %c0_i32_1 = arith.constant 0 : i32
    return %c0_i32, %c0_i32_0 : i32, i32
  }
  func.func @transform_2(%arg0: i32) -> (i32, i32) {
    %c0_i32 = arith.constant 0 : i32
    %c0_i32_0 = arith.constant 0 : i32
    %c0_i32_1 = arith.constant 0 : i32
    return %c0_i32, %c0_i32_0 : i32, i32
  }
  func.func @transform_3(%arg0: i32) -> (i32, i32) {
    %c0_i32 = arith.constant 0 : i32
    %c0_i32_0 = arith.constant 0 : i32
    return %c0_i32, %arg0 : i32, i32
  }
  func.func @transform_4(%arg0: i32) -> (i32, i32) {
    %c0_i32 = arith.constant 0 : i32
    %c0_i32_0 = arith.constant 0 : i32
    return %c0_i32, %arg0 : i32, i32
  }
}

</mosaic_0001>

<llo_original>
// kernel: rlagnet_forward.1
$region0: #{rlagnet_forward.1}
  #allocation0 [shape = 'u32[]', space=smem, size = 0x4, offset = 0x4, fixed_abs, tag = 'smem constant byte address 0x4 - core index']
  #allocation1 [shape = 'u32[144,128]{1,0:T(1,128)}', space=vmem, size = 0x12000, scoped, tag = 'internal scratch']
  %s0 = inlined_call_operand.vmem [shape: f32[8,32], index: 0, kind: input, shape index: {}]
  %s1 = inlined_call_operand.vmem [shape: f32[32,8], index: 1, kind: input, shape index: {}]
  %s2 = inlined_call_operand.vmem [shape: f32[1,8], index: 2, kind: input, shape index: {}]
  %s3 = inlined_call_operand.vmem [shape: f32[1,8], index: 3, kind: input, shape index: {}]
  %s4 = inlined_call_operand.hbm [shape: s32[1,8], index: 4, kind: output, shape index: {}]
  %s5 = sld [smem:[#allocation0]]
  $region26: #{rlagnet_forward.1} parent=0
    _
  %s7 = ssub.s32 1, %s5
  %s8 = scalar_select 0, %s7, %s5
  $region1: #{rlagnet_forward.1} parent=0
    #allocation2 [shape = 'u8[512]{0}', space=vmem, size = 0x400, scoped, tag = 'output window, operand 0, single buffered']
    #allocation3 [shape = 's32[1]{0}', space=sflag, size = 0x4, scoped, tag = 'scoped memory for rlagnet_forward.1']
    %9 = vsyncpa [#allocation3], 0
    // Predicated region
    $region2: #{rlagnet_forward.1} parent=1 // pred_check
      _
    $region3: #{rlagnet_forward.1} parent=1 // pred_check_branch
      %11 = sbr.rel (0) target = $region5
    $region4: #{rlagnet_forward.1} parent=1 // pred_region
      _
    $region5: #{rlagnet_forward.1} parent=1 // pred_fallthru
      _
    // Predicated region
    $region6: #{rlagnet_forward.1} parent=1 // pred_check
      _
    $region7: #{rlagnet_forward.1} parent=1 // pred_check_branch
      %13 = sbr.rel (0) target = $region9
    $region8: #{rlagnet_forward.1} parent=1 // pred_region
      _
    $region9: #{rlagnet_forward.1} parent=1 // pred_fallthru
      _
    // Predicated region
    $region10: #{rlagnet_forward.1} parent=1 // pred_check
      _
    $region11: #{rlagnet_forward.1} parent=1 // pred_check_branch
      %15 = sbr.rel (0) target = $region13
    $region12: #{rlagnet_forward.1} parent=1 // pred_region
      _
    $region13: #{rlagnet_forward.1} parent=1 // pred_fallthru
      _
    // Predicated region
    $region14: #{rlagnet_forward.1} parent=1 // pred_check
      _
    $region15: #{rlagnet_forward.1} parent=1 // pred_check_branch
      %17 = sbr.rel (0) target = $region17
    $region16: #{rlagnet_forward.1} parent=1 // pred_region
      _
    $region17: #{rlagnet_forward.1} parent=1 // pred_fallthru
      _
    %v18 = vld [vmem:[%s0] sm:$0xff]
    %v19 = vld [vmem:[%s1] sm:$0xff]
    %v20 = vld [vmem:[%s1 + $0x8] sm:$0xff]
    %v21 = vld [vmem:[%s1 + $0x10] sm:$0xff]
    %v22 = vld [vmem:[%s1 + $0x18] sm:$0xff]
    %vm23 = vcmask 261120
    %v25 = vsel %vm23, %v18, 0
    %27 = vmatprep.subr.mxu0 0.0
    %28 = vmatpush1.msra.mxu0 0.0
    %29 = vmatprep.subr.mxu0 0.0
    %30 = vmatpush1.msra.mxu0 0.0
    %31 = vmatprep.subr.mxu0 0.0
    %32 = vmatpush1.msra.mxu0 0.0
    %33 = vmatprep.subr.mxu0 0.0
    %34 = vmatpush1.msra.mxu0 0.0
    %35 = vmatprep.subr.mxu0 0.0
    %36 = vmatpush1.msra.mxu0 0.0
    %37 = vmatprep.subr.mxu0 0.0
    %38 = vmatpush1.msra.mxu0 0.0
    %39 = vmatprep.subr.mxu0 0.0
    %40 = vmatpush1.msra.mxu0 0.0
    %41 = vmatprep.subr.mxu0 0.0
    %42 = vmatpush1.msra.mxu0 0.0
    %43 = vmatprep.subr.mxu0 0.0
    %44 = vmatpush1.msra.mxu0 0.0
    %45 = vmatprep.subr.mxu0 0.0
    %46 = vmatpush1.msra.mxu0 0.0
    %47 = vmatprep.subr.mxu0 0.0
    %48 = vmatpush1.msra.mxu0 0.0
    %49 = vmatprep.subr.mxu0 0.0
    %50 = vmatpush1.msra.mxu0 0.0
    %51 = vmatprep.subr.mxu0 0.0
    %52 = vmatpush1.msra.mxu0 %v22
    %53 = vmatprep.subr.mxu0 0.0
    %54 = vmatpush1.msra.mxu0 %v21
    %55 = vmatprep.subr.mxu0 0.0
    %56 = vmatpush1.msra.mxu0 %v20
    %57 = vmatprep.subr.mxu0 0.0
    %58 = vmatpush1.msra.mxu0 %v19
    %59 = vmatprep.subr.mxu0 0.0
    %60 = vmatpush2.msra.mxu0 0.0
    %61 = vmatprep.subr.mxu0 0.0
    %62 = vmatpush2.msra.mxu0 0.0
    %63 = vmatprep.subr.mxu0 0.0
    %64 = vmatpush2.msra.mxu0 0.0
    %65 = vmatprep.subr.mxu0 0.0
    %66 = vmatpush2.msra.mxu0 0.0
    %67 = vmatprep.subr.mxu0 0.0
    %68 = vmatpush2.msra.mxu0 0.0
    %69 = vmatprep.subr.mxu0 0.0
    %70 = vmatpush2.msra.mxu0 0.0
    %71 = vmatprep.subr.mxu0 0.0
    %72 = vmatpush2.msra.mxu0 0.0
    %73 = vmatprep.subr.mxu0 0.0
    %74 = vmatpush2.msra.mxu0 0.0
    %75 = vmatprep.subr.mxu0 0.0
    %76 = vmatpush2.msra.mxu0 0.0
    %77 = vmatprep.subr.mxu0 0.0
    %78 = vmatpush2.msra.mxu0 0.0
    %79 = vmatprep.subr.mxu0 0.0
    %80 = vmatpush2.msra.mxu0 0.0
    %81 = vmatprep.subr.mxu0 0.0
    %82 = vmatpush2.msra.mxu0 0.0
    %83 = vmatprep.subr.mxu0 0.0
    %84 = vmatpush2.msra.mxu0 0.0
    %85 = vmatprep.subr.mxu0 0.0
    %86 = vmatpush2.msra.mxu0 0.0
    %87 = vmatprep.subr.mxu0 0.0
    %88 = vmatpush2.msra.mxu0 0.0
    %89 = vmatprep.subr.mxu0 0.0
    %90 = vmatpush2.msra.mxu0 0.0
    %91 = vmatprep.mubr.f32.mxu0 0.0
    %92 = vmatmul.mubr.f32.gmra.mxu0 %v25
    %v93 = vpop.f32.mrf.mxu0
    %v94 = vadd.f32 0.0, %v93
    %v95 = vpop.f32.mrf.mxu0
    %96 = vdwg.mxu0
    %v97 = vmax.f32 %v94, 0.0
    %v98 = vld [vmem:[%s2] sm:$0x1]
    %vm99 = vcmask 64512
    %v101 = vsel %vm99, %v98, 0
    %v104 = vsel %vm99, %v97, 0
    %106 = vmatprep.subr.mxu0 0.0
    %107 = vmatpush1.xpose.msra.mxu0 0.0
    %108 = vmatprep.subr.mxu0 0.0
    %109 = vmatpush1.xpose.msra.mxu0 0.0
    %110 = vmatprep.subr.mxu0 0.0
    %111 = vmatpush1.xpose.msra.mxu0 0.0
    %112 = vmatprep.subr.mxu0 0.0
    %113 = vmatpush1.xpose.msra.mxu0 0.0
    %114 = vmatprep.subr.mxu0 0.0
    %115 = vmatpush1.xpose.msra.mxu0 0.0
    %116 = vmatprep.subr.mxu0 0.0
    %117 = vmatpush1.xpose.msra.mxu0 0.0
    %118 = vmatprep.subr.mxu0 0.0
    %119 = vmatpush1.xpose.msra.mxu0 0.0
    %120 = vmatprep.subr.mxu0 0.0
    %121 = vmatpush1.xpose.msra.mxu0 0.0
    %122 = vmatprep.subr.mxu0 0.0
    %123 = vmatpush1.xpose.msra.mxu0 0.0
    %124 = vmatprep.subr.mxu0 0.0
    %125 = vmatpush1.xpose.msra.mxu0 0.0
    %126 = vmatprep.subr.mxu0 0.0
    %127 = vmatpush1.xpose.msra.mxu0 0.0
    %128 = vmatprep.subr.mxu0 0.0
    %129 = vmatpush1.xpose.msra.mxu0 0.0
    %130 = vmatprep.subr.mxu0 0.0
    %131 = vmatpush1.xpose.msra.mxu0 0.0
    %132 = vmatprep.subr.mxu0 0.0
    %133 = vmatpush1.xpose.msra.mxu0 0.0
    %134 = vmatprep.subr.mxu0 0.0
    %135 = vmatpush1.xpose.msra.mxu0 0.0
    %136 = vmatprep.subr.mxu0 0.0
    %137 = vmatpush1.xpose.msra.mxu0 %v104
    %138 = vmatprep.subr.mxu0 0.0
    %139 = vmatpush2.xpose.msra.mxu0 0.0
    %140 = vmatprep.subr.mxu0 0.0
    %141 = vmatpush2.xpose.msra.mxu0 0.0
    %142 = vmatprep.subr.mxu0 0.0
    %143 = vmatpush2.xpose.msra.mxu0 0.0
    %144 = vmatprep.subr.mxu0 0.0
    %145 = vmatpush2.xpose.msra.mxu0 0.0
    %146 = vmatprep.subr.mxu0 0.0
    %147 = vmatpush2.xpose.msra.mxu0 0.0
    %148 = vmatprep.subr.mxu0 0.0
    %149 = vmatpush2.xpose.msra.mxu0 0.0
    %150 = vmatprep.subr.mxu0 0.0
    %151 = vmatpush2.xpose.msra.mxu0 0.0
    %152 = vmatprep.subr.mxu0 0.0
    %153 = vmatpush2.xpose.msra.mxu0 0.0
    %154 = vmatprep.subr.mxu0 0.0
    %155 = vmatpush2.xpose.msra.mxu0 0.0
    %156 = vmatprep.subr.mxu0 0.0
    %157 = vmatpush2.xpose.msra.mxu0 0.0
    %158 = vmatprep.subr.mxu0 0.0
    %159 = vmatpush2.xpose.msra.mxu0 0.0
    %160 = vmatprep.subr.mxu0 0.0
    %161 = vmatpush2.xpose.msra.mxu0 0.0
    %162 = vmatprep.subr.mxu0 0.0
    %163 = vmatpush2.xpose.msra.mxu0 0.0
    %164 = vmatprep.subr.mxu0 0.0
    %165 = vmatpush2.xpose.msra.mxu0 0.0
    %166 = vmatprep.subr.mxu0 0.0
    %167 = vmatpush2.xpose.msra.mxu0 0.0
    %168 = vmatprep.subr.mxu0 0.0
    %169 = vmatpush2.xpose.msra.mxu0 0.0
    %170 = vmatprep.mubr.f32.mxu0 0.0
    %171 = vmatmul.mubr.f32.gmra.mxu0 %v101
    %v172 = vpop.f32.mrf.mxu0
    %v173 = vadd.f32 0.0, %v172
    %v174 = vpop.f32.mrf.mxu0
    %175 = vdwg.mxu0
    %v176 = vmul.f32 %v173, 1.442695
    %v177 = vpow.pop %v176
    %v178 = vld [vmem:[%s3] sm:$0x1]
    %v179 = vadd.f32 %v177, 1.0
    %v180 = vmul.f32 %v178, %v179
    %vm181 = vcmp.ge.f32.partialorder %v180, 1.0
    %v182 = vsel %vm181, 1, 0
    %vm183 = vcmask 57344
    %184 = vst.msk [vmem:[#allocation2] sm:$0x1] %vm183, %v182
    // Predicated region
    $region18: #{rlagnet_forward.1} parent=1 // pred_check
      _
    $region19: #{rlagnet_forward.1} parent=1 // pred_check_branch
      %186 = sbr.rel (0) target = $region21
    $region20: #{rlagnet_forward.1} parent=1 // pred_region
      %s188 = ssub.s32 16, 16
      %189 = vsyncadd [#allocation3], %s188
      %s191 = sshll.u32 [#allocation2], 4
      %s192 = int_to_ptr.vmem [resolvable:$true] %s191
      %194 = dma.vmem_to_hbm [thread:$0]  %s192, 16, %s4, [#allocation3]
    $region21: #{rlagnet_forward.1} parent=1 // pred_fallthru
      _
    // Predicated region
    $region22: #{rlagnet_forward.1} parent=1 // pred_check
      _
    $region23: #{rlagnet_forward.1} parent=1 // pred_check_branch
      %196 = sbr.rel (0) target = $region25
    $region24: #{rlagnet_forward.1} parent=1 // pred_region
      %197 = dma.done [#allocation3], 16
    $region25: #{rlagnet_forward.1} parent=1 // pred_fallthru
      _
    %198 = vsyncpa [#allocation3], 1

</llo_original>
